<compile_context>
chip_gen: v5e
topology: v5e:2x2
jax: 0.10.0
libtpu: 0.0.40
codegen_flags: <defaults>
</compile_context>

<pallas_src>
from functools import partial

import jax
import jax.numpy as jnp
from jax.experimental import pallas as pl
from jax.experimental.pallas import tpu as pltpu

_SQRT1_2 = 0.7071067811865476


# ----------------------------------------------------------------------------
# In-kernel math helpers (only exp/tanh/VPU ops -> guaranteed Mosaic lowerings)
# ----------------------------------------------------------------------------
def _erf(x):
    # Abramowitz & Stegun 7.1.26, |err| <= 1.5e-7 (far below test tolerance).
    z = jnp.abs(x)
    t = 1.0 / (1.0 + 0.3275911 * z)
    poly = t * (0.254829592 + t * (-0.284496736 + t * (1.421413741
               + t * (-1.453152027 + t * 1.061405429))))
    e = 1.0 - poly * jnp.exp(-z * z)
    return jnp.where(x < 0, -e, e)


def _gelu_exact(x):
    # erf-based GELU == PyTorch nn.GELU() default.
    return 0.5 * x * (1.0 + _erf(x * _SQRT1_2))


def _sigmoid(x):
    # sigmoid(x) = 0.5*(tanh(x/2)+1): numerically stable, one EUP op.
    return 0.5 * (jnp.tanh(0.5 * x) + 1.0)


# ----------------------------------------------------------------------------
# Kernel
# ----------------------------------------------------------------------------
def gobal_kernel(x_ref, d2t_ref, u2t_ref, w1k_ref, b1_ref, w2k_ref, b2_ref,
                 w3k_ref, b3r_ref, o_ref):
    # x_ref  : (B_blk*C, H*W)   stacked batch block, lane-dense spatial layout
    # d2t    : (H*W, C*C)   kron(Dh, Dw)^T  - bilinear downsample, one matmul
    # u2t    : (C*C, H*W)   kron(Uh, Uw)^T  - bilinear upsample,  one matmul
    # w1k/w2k: (B_blk*C, B_blk*C) kron(I_Bblk, conv weight) - block-diag 1x1 conv
    # b1/b2  : (B_blk*C, 1) stacked biases
    # w3k    : (C*C, C*C)   kron(W3^T, I_C) - conv3 + both surrounding permutes
    # b3r    : (1, C*C)     b3 repeated so column q*C+j carries b3[q]
    # o_ref  : (B_blk*C, H*W)
    cdt = d2t_ref.dtype                        # MXU input dtype (bf16 or f32)
    x = x_ref[...].astype(jnp.float32)         # kept f32 for the final gate

    # bilinear downsample (H, W) -> (C, C): batch-folded single matmul
    y = jnp.dot(x.astype(cdt), d2t_ref[...],
                preferred_element_type=jnp.float32)            # (BC, CC)

    # conv1 (1x1, block-diagonal over the stacked batch) + exact GELU
    y = jnp.dot(w1k_ref[...], y.astype(cdt),
                preferred_element_type=jnp.float32) + b1_ref[...]
    y = _gelu_exact(y)

    # permute(0,1,3,2) is pure column bookkeeping in this layout;
    # conv2 (1x1, block-diagonal) + exact GELU
    y = jnp.dot(w2k_ref[...], y.astype(cdt),
                preferred_element_type=jnp.float32) + b2_ref[...]
    y = _gelu_exact(y)

    # permute(0,3,2,1) + conv3 + permute(0,3,1,2) fused into one right-multiply
    # (a pure column operator -> also folds over the stacked batch); result
    # columns are already (q*C + j), exactly what the upsample operator expects.
    y = jnp.dot(y.astype(cdt), w3k_ref[...],
                preferred_element_type=jnp.float32) + b3r_ref[...]
    y = _sigmoid(y)

    # bilinear upsample (C, C) -> (H, W): batch-folded single matmul
    y = jnp.dot(y.astype(cdt), u2t_ref[...],
                preferred_element_type=jnp.float32)            # (BC, HW)

    # gate the (f32) input; lane-dense unmasked store
    o_ref[...] = (x * y).astype(o_ref.dtype)


# ----------------------------------------------------------------------------
# Host-side operator construction + pallas_call wrapper
# ----------------------------------------------------------------------------
def _interp_matrix(out_size, in_size):
    """1-D bilinear interpolation operator M (out, in), align_corners=True:
    out[i] = sum_h M[i, h] * in[h]  (matches F.interpolate along one axis)."""
    if out_size == 1:
        src = jnp.zeros((1,), jnp.float32)
    else:
        src = jnp.arange(out_size, dtype=jnp.float32) * ((in_size - 1) / (out_size - 1))
    lo = jnp.clip(jnp.floor(src), 0, in_size - 1).astype(jnp.int32)
    hi = jnp.minimum(lo + 1, in_size - 1)
    frac = src - lo.astype(jnp.float32)
    cols = jnp.arange(in_size)[None, :]
    return ((cols == lo[:, None]).astype(jnp.float32) * (1.0 - frac)[:, None]
            + (cols == hi[:, None]).astype(jnp.float32) * frac[:, None])


def _default_batch_block(n):
    """2 'parallel' grid steps on multi-TensorCore chips (v7x, v4/v5p megacore),
    1 step on single-TC chips (v5e/v6e) where each step costs ~0.35us of fixed
    overhead on this latency-bound kernel."""
    try:
        kind = jax.devices()[0].device_kind.lower()
    except Exception:
        kind = ""
    multi_tc = any(t in kind for t in ("v7", "7x", "v4", "v5p"))
    if multi_tc and n >= 2 and n % 2 == 0:
        return n // 2
    return n


@partial(jax.jit, static_argnames=("op_dtype", "batch_block"))
def gobal_pallas(x, w1, b1, w2, b2, w3, b3, *, op_dtype=jnp.bfloat16,
                 batch_block=None):
    """x: (N, C, H, W). w*: (C, C) = PyTorch conv*.weight[:, :, 0, 0]. b*: (C,)."""
    N, C, H, W = x.shape
    HW, CC = H * W, C * C
    f32 = jnp.float32

    if batch_block is None:
        batch_block = _default_batch_block(N)
    if N % batch_block != 0:
        batch_block = N                    # avoid ragged (garbage-padded) blocks
    num_steps = N // batch_block
    BC = batch_block * C

    # --- constant operators (tiny; built at trace time) ----------------------
    # Both bilinear resizes are separable -> fused into single matmul operators
    # via Kronecker products; conv3 + its two surrounding permutes fuse into a
    # right-multiply kron(W3^T, I_C); conv1/conv2 lift to the stacked layout as
    # block-diagonal kron(I_Bblk, W).
    # TODO(synk): at real SAFMN sizes (large H*W, C) replace the dense kron
    # resize operators with a separable two-pass resize / HW-tiled accumulator
    # grid axis so they fit v7x's 64 MiB VMEM.
    dh, dw = _interp_matrix(C, H), _interp_matrix(C, W)
    uh, uw = _interp_matrix(H, C), _interp_matrix(W, C)
    d2t = jnp.kron(dh, dw).T.astype(op_dtype)                    # (H*W, C*C)
    u2t = jnp.kron(uh, uw).T.astype(op_dtype)                    # (C*C, H*W)
    eye_b = jnp.eye(batch_block, dtype=f32)
    eye_c = jnp.eye(C, dtype=f32)
    w1k = jnp.kron(eye_b, w1.astype(f32)).astype(op_dtype)       # (BC, BC)
    w2k = jnp.kron(eye_b, w2.astype(f32)).astype(op_dtype)       # (BC, BC)
    w3k = jnp.kron(w3.astype(f32).T, eye_c).astype(op_dtype)     # (CC, CC)
    b1s = jnp.tile(b1.astype(f32), batch_block).reshape(BC, 1)
    b2s = jnp.tile(b2.astype(f32), batch_block).reshape(BC, 1)
    b3r = jnp.repeat(b3.astype(f32), C).reshape(1, CC)           # b3[q] at col q*C+j

    x2d = x.reshape(N * C, HW)            # free leading-dim collapse, HW in lanes

    op_bytes = jnp.dtype(op_dtype).itemsize
    flops = num_steps * 2 * (BC * HW * CC        # downsample
                             + BC * BC * CC      # conv1 (block-diag)
                             + BC * BC * CC      # conv2 (block-diag)
                             + BC * CC * CC      # conv3 (kron-fused)
                             + BC * CC * HW)     # upsample
    cost = pl.CostEstimate(
        flops=int(flops),
        transcendentals=int(num_steps * 3 * BC * CC),
        bytes_accessed=int(2 * N * C * HW * x.dtype.itemsize
                           + (d2t.size + u2t.size + w1k.size + w2k.size
                              + w3k.size) * op_bytes
                           + (b1s.size + b2s.size + b3r.size) * 4))

    out2d = pl.pallas_call(
        gobal_kernel,
        out_shape=jax.ShapeDtypeStruct((N * C, HW), x.dtype),
        grid_spec=pltpu.PrefetchScalarGridSpec(
            num_scalar_prefetch=0,
            grid=(num_steps,),
            in_specs=[
                pl.BlockSpec((BC, HW), lambda n: (n, 0)),    # x (stacked batch)
                pl.BlockSpec((HW, CC), lambda n: (0, 0)),    # downsample operator
                pl.BlockSpec((CC, HW), lambda n: (0, 0)),    # upsample operator
                pl.BlockSpec((BC, BC), lambda n: (0, 0)),    # kron(I_B, w1)
                pl.BlockSpec((BC, 1),  lambda n: (0, 0)),    # b1 (stacked)
                pl.BlockSpec((BC, BC), lambda n: (0, 0)),    # kron(I_B, w2)
                pl.BlockSpec((BC, 1),  lambda n: (0, 0)),    # b2 (stacked)
                pl.BlockSpec((CC, CC), lambda n: (0, 0)),    # kron(w3^T, I_C)
                pl.BlockSpec((1, CC),  lambda n: (0, 0)),    # b3 (repeated)
            ],
            out_specs=pl.BlockSpec((BC, HW), lambda n: (n, 0)),
        ),
        compiler_params=pltpu.CompilerParams(
            dimension_semantics=("parallel",)),
        cost_estimate=cost,
    )(x2d, d2t, u2t, w1k, b1s, w2k, b2s, w3k, b3r)

    return out2d.reshape(N, C, H, W)


# ----------------------------------------------------------------------------
# Pure-JAX reference (mirrors the PyTorch forward op-by-op, independent path)
# ----------------------------------------------------------------------------
def _bilinear_resize_ac(x, out_h, out_w):
    """F.interpolate(x, (out_h, out_w), mode='bilinear', align_corners=True)."""
    N, C, H, W = x.shape

    def src(out_size, in_size):
        if out_size == 1:
            return jnp.zeros((1,), jnp.float32)
        return jnp.arange(out_size, dtype=jnp.float32) * ((in_size - 1) / (out_size - 1))

    sh, sw = src(out_h, H), src(out_w, W)
    h0 = jnp.clip(jnp.floor(sh), 0, H - 1).astype(jnp.int32)
    h1 = jnp.minimum(h0 + 1, H - 1)
    w0 = jnp.clip(jnp.floor(sw), 0, W - 1).astype(jnp.int32)
    w1 = jnp.minimum(w0 + 1, W - 1)
    fh = (sh - h0)[None, None, :, None]
    fw = (sw - w0)[None, None, None, :]

    def g(hi, wi):
        return x[:, :, hi, :][:, :, :, wi]

    top = g(h0, w0) * (1.0 - fw) + g(h0, w1) * fw
    bot = g(h1, w0) * (1.0 - fw) + g(h1, w1) * fw
    return top * (1.0 - fh) + bot * fh


def gobal_ref(x, w1, b1, w2, b2, w3, b3):
    N, C, H, W = x.shape
    hp = jax.lax.Precision.HIGHEST
    y = _bilinear_resize_ac(x, C, C)
    y = jax.nn.gelu(jnp.einsum('oc,nchw->nohw', w1, y, precision=hp)
                    + b1[None, :, None, None], approximate=False)
    y = jnp.transpose(y, (0, 1, 3, 2))
    y = jax.nn.gelu(jnp.einsum('po,nohw->nphw', w2, y, precision=hp)
                    + b2[None, :, None, None], approximate=False)
    y = jnp.transpose(y, (0, 3, 2, 1))
    y = jax.nn.sigmoid(jnp.einsum('qi,nihw->nqhw', w3, y, precision=hp)
                       + b3[None, :, None, None])
    y = jnp.transpose(y, (0, 3, 1, 2))
    y = _bilinear_resize_ac(y, H, W)
    return x * y


if __name__ == "__main__":
    key = jax.random.PRNGKey(0)
    N, C, H, W = 2, 8, 16, 16          # PyTorch input: (N, dim, H, W)
    ks = jax.random.split(key, 7)

    x = jax.random.normal(ks[0], (N, C, H, W), jnp.float32)
    # 1x1-conv parameters (== PyTorch conv.weight[:, :, 0, 0] / conv.bias)
    w1 = jax.random.normal(ks[1], (C, C), jnp.float32) * 0.3
    w2 = jax.random.normal(ks[2], (C, C), jnp.float32) * 0.3
    w3 = jax.random.normal(ks[3], (C, C), jnp.float32) * 0.3
    b1 = jax.random.normal(ks[4], (C,), jnp.float32) * 0.1
    b2 = jax.random.normal(ks[5], (C,), jnp.float32) * 0.1
    b3 = jax.random.normal(ks[6], (C,), jnp.float32) * 0.1

    ref = jax.block_until_ready(gobal_ref(x, w1, b1, w2, b2, w3, b3))

    # Performance configuration (bf16 constant operators, f32 accumulation).
    out = jax.block_until_ready(gobal_pallas(x, w1, b1, w2, b2, w3, b3))
    # Reference-accuracy configuration (f32 operators) for a tight check.
    out_f32 = jax.block_until_ready(
        gobal_pallas(x, w1, b1, w2, b2, w3, b3, op_dtype=jnp.float32))

    assert out.shape == (N, C, H, W) and out_f32.shape == (N, C, H, W)

    if not jnp.allclose(out_f32, ref, atol=1e-3, rtol=1e-3):
        err = float(jnp.max(jnp.abs(out_f32 - ref)))
        raise ValueError(f"f32 Pallas output mismatch vs JAX reference (max abs err {err})")
    if not jnp.allclose(out, ref, atol=3e-2, rtol=3e-2):
        err = float(jnp.max(jnp.abs(out - ref)))
        raise ValueError(f"bf16 Pallas output mismatch vs JAX reference (max abs err {err})")

    print("KERNEL_OK")
</pallas_src>

<mosaic_0001>
module attributes {stable_mosaic.version = 11 : i64} {
  func.func @gobal_kernel(%arg0: i32, %arg1: memref<16x256xf32, #tpu.memory_space<vmem>>, %arg2: memref<256x64xbf16, #tpu.memory_space<vmem>>, %arg3: memref<64x256xbf16, #tpu.memory_space<vmem>>, %arg4: memref<16x16xbf16, #tpu.memory_space<vmem>>, %arg5: memref<16x1xf32, #tpu.memory_space<vmem>>, %arg6: memref<16x16xbf16, #tpu.memory_space<vmem>>, %arg7: memref<16x1xf32, #tpu.memory_space<vmem>>, %arg8: memref<64x64xbf16, #tpu.memory_space<vmem>>, %arg9: memref<1x64xf32, #tpu.memory_space<vmem>>, %arg10: memref<16x256xf32, #tpu.memory_space<vmem>>) attributes {dimension_semantics = [#tpu.dimension_semantics<parallel>], iteration_bounds = array<i64: 1>, scalar_prefetch = 0 : i64, scratch_operands = 0 : i64, tpu.core_type = #tpu.core_type<tc>, window_params = [{transform_indices = @transform_0, window_bounds = array<i64: 16, 256>}, {pipeline_mode = #tpu.pipeline_mode<synchronous>, transform_indices = @transform_1, window_bounds = array<i64: 256, 64>}, {pipeline_mode = #tpu.pipeline_mode<synchronous>, transform_indices = @transform_2, window_bounds = array<i64: 64, 256>}, {pipeline_mode = #tpu.pipeline_mode<synchronous>, transform_indices = @transform_3, window_bounds = array<i64: 16, 16>}, {pipeline_mode = #tpu.pipeline_mode<synchronous>, transform_indices = @transform_4, window_bounds = array<i64: 16, 1>}, {pipeline_mode = #tpu.pipeline_mode<synchronous>, transform_indices = @transform_5, window_bounds = array<i64: 16, 16>}, {pipeline_mode = #tpu.pipeline_mode<synchronous>, transform_indices = @transform_6, window_bounds = array<i64: 16, 1>}, {pipeline_mode = #tpu.pipeline_mode<synchronous>, transform_indices = @transform_7, window_bounds = array<i64: 64, 64>}, {pipeline_mode = #tpu.pipeline_mode<synchronous>, transform_indices = @transform_8, window_bounds = array<i64: 1, 64>}, {transform_indices = @transform_9, window_bounds = array<i64: 16, 256>}]} {
    %c0 = arith.constant 0 : index
    %c0_0 = arith.constant 0 : index
    %0 = vector.load %arg1[%c0, %c0_0] : memref<16x256xf32, #tpu.memory_space<vmem>>, vector<16x256xf32>
    %1 = arith.truncf %0 : vector<16x256xf32> to vector<16x256xbf16>
    %c0_1 = arith.constant 0 : index
    %c0_2 = arith.constant 0 : index
    %2 = vector.load %arg2[%c0_1, %c0_2] : memref<256x64xbf16, #tpu.memory_space<vmem>>, vector<256x64xbf16>
    %cst = arith.constant dense<0.000000e+00> : vector<16x64xf32>
    %3 = tpu.matmul %1, %2, %cst {dimension_numbers = #tpu.dot_dimension_numbers<[1], [0], [0], [1], [0, 0, 1, 1], [], []>} : vector<16x256xbf16>, vector<256x64xbf16>, vector<16x64xf32> -> vector<16x64xf32>
    %c0_3 = arith.constant 0 : index
    %c0_4 = arith.constant 0 : index
    %4 = vector.load %arg4[%c0_3, %c0_4] : memref<16x16xbf16, #tpu.memory_space<vmem>>, vector<16x16xbf16>
    %5 = arith.truncf %3 : vector<16x64xf32> to vector<16x64xbf16>
    %cst_5 = arith.constant dense<0.000000e+00> : vector<16x64xf32>
    %6 = tpu.matmul %4, %5, %cst_5 {dimension_numbers = #tpu.dot_dimension_numbers<[1], [0], [0], [1], [0, 0, 1, 1], [], []>} : vector<16x16xbf16>, vector<16x64xbf16>, vector<16x64xf32> -> vector<16x64xf32>
    %c0_6 = arith.constant 0 : index
    %c0_7 = arith.constant 0 : index
    %7 = vector.load %arg5[%c0_6, %c0_7] : memref<16x1xf32, #tpu.memory_space<vmem>>, vector<16x1xf32>
    %8 = vector.broadcast %7 : vector<16x1xf32> to vector<16x64xf32>
    %9 = arith.addf %6, %8 : vector<16x64xf32>
    %cst_8 = arith.constant 5.000000e-01 : f32
    %10 = vector.broadcast %cst_8 : f32 to vector<16x64xf32>
    %11 = arith.mulf %10, %9 : vector<16x64xf32>
    %cst_9 = arith.constant 0.707106769 : f32
    %12 = vector.broadcast %cst_9 : f32 to vector<16x64xf32>
    %13 = arith.mulf %9, %12 : vector<16x64xf32>
    %14 = math.absf %13 : vector<16x64xf32>
    %cst_10 = arith.constant 0.327591091 : f32
    %15 = vector.broadcast %cst_10 : f32 to vector<16x64xf32>
    %16 = arith.mulf %15, %14 : vector<16x64xf32>
    %cst_11 = arith.constant 1.000000e+00 : f32
    %17 = vector.broadcast %cst_11 : f32 to vector<16x64xf32>
    %18 = arith.addf %17, %16 : vector<16x64xf32>
    %cst_12 = arith.constant 1.000000e+00 : f32
    %19 = vector.broadcast %cst_12 : f32 to vector<16x64xf32>
    %20 = arith.divf %19, %18 : vector<16x64xf32>
    %cst_13 = arith.constant 1.06140542 : f32
    %21 = vector.broadcast %cst_13 : f32 to vector<16x64xf32>
    %22 = arith.mulf %20, %21 : vector<16x64xf32>
    %cst_14 = arith.constant -1.45315206 : f32
    %23 = vector.broadcast %cst_14 : f32 to vector<16x64xf32>
    %24 = arith.addf %23, %22 : vector<16x64xf32>
    %25 = arith.mulf %20, %24 : vector<16x64xf32>
    %cst_15 = arith.constant 1.42141378 : f32
    %26 = vector.broadcast %cst_15 : f32 to vector<16x64xf32>
    %27 = arith.addf %26, %25 : vector<16x64xf32>
    %28 = arith.mulf %20, %27 : vector<16x64xf32>
    %cst_16 = arith.constant -0.284496725 : f32
    %29 = vector.broadcast %cst_16 : f32 to vector<16x64xf32>
    %30 = arith.addf %29, %28 : vector<16x64xf32>
    %31 = arith.mulf %20, %30 : vector<16x64xf32>
    %cst_17 = arith.constant 0.254829586 : f32
    %32 = vector.broadcast %cst_17 : f32 to vector<16x64xf32>
    %33 = arith.addf %32, %31 : vector<16x64xf32>
    %34 = arith.mulf %20, %33 : vector<16x64xf32>
    %cst_18 = arith.constant 0.000000e+00 : f32
    %35 = vector.broadcast %cst_18 : f32 to vector<16x64xf32>
    %36 = arith.subf %35, %14 : vector<16x64xf32>
    %37 = arith.mulf %36, %14 : vector<16x64xf32>
    %38 = math.exp %37 : vector<16x64xf32>
    %39 = arith.mulf %34, %38 : vector<16x64xf32>
    %cst_19 = arith.constant 1.000000e+00 : f32
    %40 = vector.broadcast %cst_19 : f32 to vector<16x64xf32>
    %41 = arith.subf %40, %39 : vector<16x64xf32>
    %cst_20 = arith.constant 0.000000e+00 : f32
    %42 = vector.broadcast %cst_20 : f32 to vector<16x64xf32>
    %43 = arith.cmpf olt, %13, %42 : vector<16x64xf32>
    %cst_21 = arith.constant 0.000000e+00 : f32
    %44 = vector.broadcast %cst_21 : f32 to vector<16x64xf32>
    %45 = arith.subf %44, %41 : vector<16x64xf32>
    %46 = arith.select %43, %45, %41 : vector<16x64xi1>, vector<16x64xf32>
    %cst_22 = arith.constant 1.000000e+00 : f32
    %47 = vector.broadcast %cst_22 : f32 to vector<16x64xf32>
    %48 = arith.addf %47, %46 : vector<16x64xf32>
    %49 = arith.mulf %11, %48 : vector<16x64xf32>
    %c0_23 = arith.constant 0 : index
    %c0_24 = arith.constant 0 : index
    %50 = vector.load %arg6[%c0_23, %c0_24] : memref<16x16xbf16, #tpu.memory_space<vmem>>, vector<16x16xbf16>
    %51 = arith.truncf %49 : vector<16x64xf32> to vector<16x64xbf16>
    %cst_25 = arith.constant dense<0.000000e+00> : vector<16x64xf32>
    %52 = tpu.matmul %50, %51, %cst_25 {dimension_numbers = #tpu.dot_dimension_numbers<[1], [0], [0], [1], [0, 0, 1, 1], [], []>} : vector<16x16xbf16>, vector<16x64xbf16>, vector<16x64xf32> -> vector<16x64xf32>
    %c0_26 = arith.constant 0 : index
    %c0_27 = arith.constant 0 : index
    %53 = vector.load %arg7[%c0_26, %c0_27] : memref<16x1xf32, #tpu.memory_space<vmem>>, vector<16x1xf32>
    %54 = vector.broadcast %53 : vector<16x1xf32> to vector<16x64xf32>
    %55 = arith.addf %52, %54 : vector<16x64xf32>
    %cst_28 = arith.constant 5.000000e-01 : f32
    %56 = vector.broadcast %cst_28 : f32 to vector<16x64xf32>
    %57 = arith.mulf %56, %55 : vector<16x64xf32>
    %cst_29 = arith.constant 0.707106769 : f32
    %58 = vector.broadcast %cst_29 : f32 to vector<16x64xf32>
    %59 = arith.mulf %55, %58 : vector<16x64xf32>
    %60 = math.absf %59 : vector<16x64xf32>
    %cst_30 = arith.constant 0.327591091 : f32
    %61 = vector.broadcast %cst_30 : f32 to vector<16x64xf32>
    %62 = arith.mulf %61, %60 : vector<16x64xf32>
    %cst_31 = arith.constant 1.000000e+00 : f32
    %63 = vector.broadcast %cst_31 : f32 to vector<16x64xf32>
    %64 = arith.addf %63, %62 : vector<16x64xf32>
    %cst_32 = arith.constant 1.000000e+00 : f32
    %65 = vector.broadcast %cst_32 : f32 to vector<16x64xf32>
    %66 = arith.divf %65, %64 : vector<16x64xf32>
    %cst_33 = arith.constant 1.06140542 : f32
    %67 = vector.broadcast %cst_33 : f32 to vector<16x64xf32>
    %68 = arith.mulf %66, %67 : vector<16x64xf32>
    %cst_34 = arith.constant -1.45315206 : f32
    %69 = vector.broadcast %cst_34 : f32 to vector<16x64xf32>
    %70 = arith.addf %69, %68 : vector<16x64xf32>
    %71 = arith.mulf %66, %70 : vector<16x64xf32>
    %cst_35 = arith.constant 1.42141378 : f32
    %72 = vector.broadcast %cst_35 : f32 to vector<16x64xf32>
    %73 = arith.addf %72, %71 : vector<16x64xf32>
    %74 = arith.mulf %66, %73 : vector<16x64xf32>
    %cst_36 = arith.constant -0.284496725 : f32
    %75 = vector.broadcast %cst_36 : f32 to vector<16x64xf32>
    %76 = arith.addf %75, %74 : vector<16x64xf32>
    %77 = arith.mulf %66, %76 : vector<16x64xf32>
    %cst_37 = arith.constant 0.254829586 : f32
    %78 = vector.broadcast %cst_37 : f32 to vector<16x64xf32>
    %79 = arith.addf %78, %77 : vector<16x64xf32>
    %80 = arith.mulf %66, %79 : vector<16x64xf32>
    %cst_38 = arith.constant 0.000000e+00 : f32
    %81 = vector.broadcast %cst_38 : f32 to vector<16x64xf32>
    %82 = arith.subf %81, %60 : vector<16x64xf32>
    %83 = arith.mulf %82, %60 : vector<16x64xf32>
    %84 = math.exp %83 : vector<16x64xf32>
    %85 = arith.mulf %80, %84 : vector<16x64xf32>
    %cst_39 = arith.constant 1.000000e+00 : f32
    %86 = vector.broadcast %cst_39 : f32 to vector<16x64xf32>
    %87 = arith.subf %86, %85 : vector<16x64xf32>
    %cst_40 = arith.constant 0.000000e+00 : f32
    %88 = vector.broadcast %cst_40 : f32 to vector<16x64xf32>
    %89 = arith.cmpf olt, %59, %88 : vector<16x64xf32>
    %cst_41 = arith.constant 0.000000e+00 : f32
    %90 = vector.broadcast %cst_41 : f32 to vector<16x64xf32>
    %91 = arith.subf %90, %87 : vector<16x64xf32>
    %92 = arith.select %89, %91, %87 : vector<16x64xi1>, vector<16x64xf32>
    %cst_42 = arith.constant 1.000000e+00 : f32
    %93 = vector.broadcast %cst_42 : f32 to vector<16x64xf32>
    %94 = arith.addf %93, %92 : vector<16x64xf32>
    %95 = arith.mulf %57, %94 : vector<16x64xf32>
    %96 = arith.truncf %95 : vector<16x64xf32> to vector<16x64xbf16>
    %c0_43 = arith.constant 0 : index
    %c0_44 = arith.constant 0 : index
    %97 = vector.load %arg8[%c0_43, %c0_44] : memref<64x64xbf16, #tpu.memory_space<vmem>>, vector<64x64xbf16>
    %cst_45 = arith.constant dense<0.000000e+00> : vector<16x64xf32>
    %98 = tpu.matmul %96, %97, %cst_45 {dimension_numbers = #tpu.dot_dimension_numbers<[1], [0], [0], [1], [0, 0, 1, 1], [], []>} : vector<16x64xbf16>, vector<64x64xbf16>, vector<16x64xf32> -> vector<16x64xf32>
    %c0_46 = arith.constant 0 : index
    %c0_47 = arith.constant 0 : index
    %99 = vector.load %arg9[%c0_46, %c0_47] : memref<1x64xf32, #tpu.memory_space<vmem>>, vector<1x64xf32>
    %100 = vector.broadcast %99 : vector<1x64xf32> to vector<16x64xf32>
    %101 = arith.addf %98, %100 : vector<16x64xf32>
    %cst_48 = arith.constant 5.000000e-01 : f32
    %102 = vector.broadcast %cst_48 : f32 to vector<16x64xf32>
    %103 = arith.mulf %102, %101 : vector<16x64xf32>
    %104 = math.tanh %103 : vector<16x64xf32>
    %cst_49 = arith.constant 1.000000e+00 : f32
    %105 = vector.broadcast %cst_49 : f32 to vector<16x64xf32>
    %106 = arith.addf %104, %105 : vector<16x64xf32>
    %cst_50 = arith.constant 5.000000e-01 : f32
    %107 = vector.broadcast %cst_50 : f32 to vector<16x64xf32>
    %108 = arith.mulf %107, %106 : vector<16x64xf32>
    %109 = arith.truncf %108 : vector<16x64xf32> to vector<16x64xbf16>
    %c0_51 = arith.constant 0 : index
    %c0_52 = arith.constant 0 : index
    %110 = vector.load %arg3[%c0_51, %c0_52] : memref<64x256xbf16, #tpu.memory_space<vmem>>, vector<64x256xbf16>
    %cst_53 = arith.constant dense<0.000000e+00> : vector<16x256xf32>
    %111 = tpu.matmul %109, %110, %cst_53 {dimension_numbers = #tpu.dot_dimension_numbers<[1], [0], [0], [1], [0, 0, 1, 1], [], []>} : vector<16x64xbf16>, vector<64x256xbf16>, vector<16x256xf32> -> vector<16x256xf32>
    %112 = arith.mulf %0, %111 : vector<16x256xf32>
    %c0_54 = arith.constant 0 : index
    %c0_55 = arith.constant 0 : index
    %113 = vector.load %arg10[%c0_54, %c0_55] : memref<16x256xf32, #tpu.memory_space<vmem>>, vector<16x256xf32>
    tpu.vector_store %arg10[%c0_54, %c0_55], %112 {strides = array<i32>} : memref<16x256xf32, #tpu.memory_space<vmem>>, vector<16x256xf32>,
    return
  }
  func.func @transform_0(%arg0: i32) -> (i32, i32) {
    %c0_i32 = arith.constant 0 : i32
    %c0_i32_0 = arith.constant 0 : i32
    return %arg0, %c0_i32 : i32, i32
  }
  func.func @transform_1(%arg0: i32) -> (i32, i32) {
    %c0_i32 = arith.constant 0 : i32
    %c0_i32_0 = arith.constant 0 : i32
    %c0_i32_1 = arith.constant 0 : i32
    return %c0_i32, %c0_i32_0 : i32, i32
  }
  func.func @transform_2(%arg0: i32) -> (i32, i32) {
    %c0_i32 = arith.constant 0 : i32
    %c0_i32_0 = arith.constant 0 : i32
    %c0_i32_1 = arith.constant 0 : i32
    return %c0_i32, %c0_i32_0 : i32, i32
  }
  func.func @transform_3(%arg0: i32) -> (i32, i32) {
    %c0_i32 = arith.constant 0 : i32
    %c0_i32_0 = arith.constant 0 : i32
    %c0_i32_1 = arith.constant 0 : i32
    return %c0_i32, %c0_i32_0 : i32, i32
  }
  func.func @transform_4(%arg0: i32) -> (i32, i32) {
    %c0_i32 = arith.constant 0 : i32
    %c0_i32_0 = arith.constant 0 : i32
    %c0_i32_1 = arith.constant 0 : i32
    return %c0_i32, %c0_i32_0 : i32, i32
  }
  func.func @transform_5(%arg0: i32) -> (i32, i32) {
    %c0_i32 = arith.constant 0 : i32
    %c0_i32_0 = arith.constant 0 : i32
    %c0_i32_1 = arith.constant 0 : i32
    return %c0_i32, %c0_i32_0 : i32, i32
  }
  func.func @transform_6(%arg0: i32) -> (i32, i32) {
    %c0_i32 = arith.constant 0 : i32
    %c0_i32_0 = arith.constant 0 : i32
    %c0_i32_1 = arith.constant 0 : i32
    return %c0_i32, %c0_i32_0 : i32, i32
  }
  func.func @transform_7(%arg0: i32) -> (i32, i32) {
    %c0_i32 = arith.constant 0 : i32
    %c0_i32_0 = arith.constant 0 : i32
    %c0_i32_1 = arith.constant 0 : i32
    return %c0_i32, %c0_i32_0 : i32, i32
  }
  func.func @transform_8(%arg0: i32) -> (i32, i32) {
    %c0_i32 = arith.constant 0 : i32
    %c0_i32_0 = arith.constant 0 : i32
    %c0_i32_1 = arith.constant 0 : i32
    return %c0_i32, %c0_i32_0 : i32, i32
  }
  func.func @transform_9(%arg0: i32) -> (i32, i32) {
    %c0_i32 = arith.constant 0 : i32
    %c0_i32_0 = arith.constant 0 : i32
    return %arg0, %c0_i32 : i32, i32
  }
}

</mosaic_0001>

<llo_original>
// kernel: tile.13
$region0: #{tile.13}
  #allocation0 [shape = 's32[1]{0}', space=sflag, size = 0x4, scoped, tag = 'scoped memory for tile.13']
  %s0 = inlined_call_operand.vmem [shape: f32[8], index: 0, kind: input, shape index: {}]
  %s1 = inlined_call_operand.vmem [shape: f32[2,8], index: 1, kind: output, shape index: {}]
  // Predicated region
  $region2: #{tile.13} parent=0 // pred_check
    _
  $region3: #{tile.13} parent=0 // pred_check_branch
    %3 = sbr.rel (0) target = $region5
  $region4: #{tile.13} parent=0 // pred_region
    _
  $region5: #{tile.13} parent=0 // pred_fallthru
    _
  %v4 = vld [vmem:[%s0] ss:$0 sm:$0xff]
  %5 = vst [vmem:[%s1] sm:$0x3] %v4

// kernel: tile.0
$region0: #{tile.0}
  %s0 = inlined_call_operand.vmem [shape: f32[2,8], index: 0, kind: input, shape index: {}]
  %s1 = inlined_call_operand.vmem [shape: f32[16,1], index: 1, kind: output, shape index: {}]
  $region1: #{tile.0} parent=0
    #allocation0 [shape = 'u8[4096]{0}', space=vmem, size = 0x1000, scoped, tag = 'scoped mem for input reshape']
    %s3 = ssub.s32 4, 1
    %v4 = vld [vmem:[%s0] sm:%s3]
    %5 = vst [vmem:[#allocation0] sm:%s3] %v4
    %v6 = vld [vmem:[#allocation0] sm:$0x3]
    %vm7 = vcmask 7168
    %8 = vst.msk [vmem:[%s1] ss:$8 sm:$0x3] %vm7, %v6
    %v9 = vld [vmem:[#allocation0] sm:$0x3]
    %10 = vrot.lane.b32.xlu0 %v9, 127
    %v11 = vpop.permute.xlu0 %10
    %vm12 = vcmask 7168
    %s13 = scalar_lea.vmem %s1, 1
    %14 = vst.msk [vmem:[%s13] ss:$8 sm:$0x3] %vm12, %v11
    %v15 = vld [vmem:[#allocation0] sm:$0x3]
    %16 = vrot.lane.b32.xlu0 %v15, 126
    %v17 = vpop.permute.xlu0 %16
    %vm18 = vcmask 7168
    %s19 = scalar_lea.vmem %s1, 2
    %20 = vst.msk [vmem:[%s19] ss:$8 sm:$0x3] %vm18, %v17
    %v21 = vld [vmem:[#allocation0] sm:$0x3]
    %22 = vrot.lane.b32.xlu0 %v21, 125
    %v23 = vpop.permute.xlu0 %22
    %vm24 = vcmask 7168
    %s25 = scalar_lea.vmem %s1, 3
    %26 = vst.msk [vmem:[%s25] ss:$8 sm:$0x3] %vm24, %v23
    %v27 = vld [vmem:[#allocation0] sm:$0x3]
    %28 = vrot.lane.b32.xlu0 %v27, 124
    %v29 = vpop.permute.xlu0 %28
    %vm30 = vcmask 7168
    %s31 = scalar_lea.vmem %s1, 4
    %32 = vst.msk [vmem:[%s31] ss:$8 sm:$0x3] %vm30, %v29
    %v33 = vld [vmem:[#allocation0] sm:$0x3]
    %34 = vrot.lane.b32.xlu0 %v33, 123
    %v35 = vpop.permute.xlu0 %34
    %vm36 = vcmask 7168
    %s37 = scalar_lea.vmem %s1, 5
    %38 = vst.msk [vmem:[%s37] ss:$8 sm:$0x3] %vm36, %v35
    %v39 = vld [vmem:[#allocation0] sm:$0x3]
    %40 = vrot.lane.b32.xlu0 %v39, 122
    %v41 = vpop.permute.xlu0 %40
    %vm42 = vcmask 7168
    %s43 = scalar_lea.vmem %s1, 6
    %44 = vst.msk [vmem:[%s43] ss:$8 sm:$0x3] %vm42, %v41
    %v45 = vld [vmem:[#allocation0] sm:$0x3]
    %46 = vrot.lane.b32.xlu0 %v45, 121
    %v47 = vpop.permute.xlu0 %46
    %vm48 = vcmask 7168
    %s49 = scalar_lea.vmem %s1, 7
    %50 = vst.msk [vmem:[%s49] ss:$8 sm:$0x3] %vm48, %v47

// kernel: gobal_pallas.1
$region0: #{gobal_pallas.1}
  #allocation0 [shape = 'u32[]', space=smem, size = 0x4, offset = 0x4, fixed_abs, tag = 'smem constant byte address 0x4 - core index']
  #allocation1 [shape = 'u32[72,128]{1,0:T(1,128)}', space=vmem, size = 0x9000, scoped, tag = 'internal scratch']
  %s0 = inlined_call_operand.vmem [shape: f32[16,256], index: 0, kind: input, shape index: {}]
  %s1 = inlined_call_operand.vmem [shape: bf16[256,64], index: 1, kind: input, shape index: {}]
  %s2 = inlined_call_operand.vmem [shape: bf16[64,256], index: 2, kind: input, shape index: {}]
  %s3 = inlined_call_operand.vmem [shape: bf16[16,16], index: 3, kind: input, shape index: {}]
  %s4 = inlined_call_operand.vmem [shape: f32[16,1], index: 4, kind: input, shape index: {}]
  %s5 = inlined_call_operand.vmem [shape: bf16[16,16], index: 5, kind: input, shape index: {}]
  %s6 = inlined_call_operand.vmem [shape: f32[16,1], index: 6, kind: input, shape index: {}]
  %s7 = inlined_call_operand.vmem [shape: bf16[64,64], index: 7, kind: input, shape index: {}]
  %s8 = inlined_call_operand.vmem [shape: f32[1,64], index: 8, kind: input, shape index: {}]
  %s9 = inlined_call_operand.vmem [shape: f32[16,256], index: 9, kind: output, shape index: {}]
  %s10 = sld [smem:[#allocation0]]
  $region46: #{gobal_pallas.1} parent=0
    _
  %s12 = ssub.s32 1, %s10
  %s13 = scalar_select 0, %s12, %s10
  // Predicated region
  $region2: #{gobal_pallas.1} parent=0 // pred_check
    _
  $region3: #{gobal_pallas.1} parent=0 // pred_check_branch
    %15 = sbr.rel (0) target = $region5
  $region4: #{gobal_pallas.1} parent=0 // pred_region
    _
  $region5: #{gobal_pallas.1} parent=0 // pred_fallthru
    _
  // Predicated region
  $region6: #{gobal_pallas.1} parent=0 // pred_check
    _
  $region7: #{gobal_pallas.1} parent=0 // pred_check_branch
    %17 = sbr.rel (0) target = $region9
  $region8: #{gobal_pallas.1} parent=0 // pred_region
    _
  $region9: #{gobal_pallas.1} parent=0 // pred_fallthru
    _
  // Predicated region
  $region10: #{gobal_pallas.1} parent=0 // pred_check
    _
  $region11: #{gobal_pallas.1} parent=0 // pred_check_branch
    %19 = sbr.rel (0) target = $region13
  $region12: #{gobal_pallas.1} parent=0 // pred_region
    _
  $region13: #{gobal_pallas.1} parent=0 // pred_fallthru
    _
  // Predicated region
  $region14: #{gobal_pallas.1} parent=0 // pred_check
    _
  $region15: #{gobal_pallas.1} parent=0 // pred_check_branch
    %21 = sbr.rel (0) target = $region17
  $region16: #{gobal_pallas.1} parent=0 // pred_region
    _
  $region17: #{gobal_pallas.1} parent=0 // pred_fallthru
    _
  // Predicated region
  $region18: #{gobal_pallas.1} parent=0 // pred_check
    _
  $region19: #{gobal_pallas.1} parent=0 // pred_check_branch
    %23 = sbr.rel (0) target = $region21
  $region20: #{gobal_pallas.1} parent=0 // pred_region
    _
  $region21: #{gobal_pallas.1} parent=0 // pred_fallthru
    _
  // Predicated region
  $region22: #{gobal_pallas.1} parent=0 // pred_check
    _
  $region23: #{gobal_pallas.1} parent=0 // pred_check_branch
    %25 = sbr.rel (0) target = $region25
  $region24: #{gobal_pallas.1} parent=0 // pred_region
    _
  $region25: #{gobal_pallas.1} parent=0 // pred_fallthru
    _
  // Predicated region
  $region26: #{gobal_pallas.1} parent=0 // pred_check
    _
  $region27: #{gobal_pallas.1} parent=0 // pred_check_branch
    %27 = sbr.rel (0) target = $region29
  $region28: #{gobal_pallas.1} parent=0 // pred_region
    _
  $region29: #{gobal_pallas.1} parent=0 // pred_fallthru
    _
  // Predicated region
  $region30: #{gobal_pallas.1} parent=0 // pred_check
    _
  $region31: #{gobal_pallas.1} parent=0 // pred_check_branch
    %29 = sbr.rel (0) target = $region33
  $region32: #{gobal_pallas.1} parent=0 // pred_region
    _
  $region33: #{gobal_pallas.1} parent=0 // pred_fallthru
    _
  // Predicated region
  $region34: #{gobal_pallas.1} parent=0 // pred_check
    _
  $region35: #{gobal_pallas.1} parent=0 // pred_check_branch
    %31 = sbr.rel (0) target = $region37
  $region36: #{gobal_pallas.1} parent=0 // pred_region
    _
  $region37: #{gobal_pallas.1} parent=0 // pred_fallthru
    _
  %v33 = vld [vmem:[%s0] sm:$0xff]
  %v34 = vld [vmem:[%s0 + $0x8] sm:$0xff]
  %v35 = vld [vmem:[%s0 + $0x10] sm:$0xff]
  %v36 = vld [vmem:[%s0 + $0x18] sm:$0xff]
  %v37 = vpack.c.bf16 %v35, %v33
  %v38 = vpack.c.bf16 %v36, %v34
  %v39 = vld [vmem:[%s1] sm:$0xf]
  %v40 = vld [vmem:[%s1 + $0x4] sm:$0xf]
  %v41 = vld [vmem:[%s1 + $0x8] sm:$0xf]
  %v42 = vld [vmem:[%s1 + $0xc] sm:$0xf]
  %v43 = vld [vmem:[%s1 + $0x10] sm:$0xf]
  %v44 = vld [vmem:[%s1 + $0x14] sm:$0xf]
  %v45 = vld [vmem:[%s1 + $0x18] sm:$0xf]
  %v46 = vld [vmem:[%s1 + $0x1c] sm:$0xf]
  %v47 = vld [vmem:[%s1 + $0x20] sm:$0xf]
  %v48 = vld [vmem:[%s1 + $0x24] sm:$0xf]
  %v49 = vld [vmem:[%s1 + $0x28] sm:$0xf]
  %v50 = vld [vmem:[%s1 + $0x2c] sm:$0xf]
  %v51 = vld [vmem:[%s1 + $0x30] sm:$0xf]
  %v52 = vld [vmem:[%s1 + $0x34] sm:$0xf]
  %v53 = vld [vmem:[%s1 + $0x38] sm:$0xf]
  %v54 = vld [vmem:[%s1 + $0x3c] sm:$0xf]
  %v55 = vld [vmem:[%s1 + $0x40] sm:$0xf]
  %v56 = vld [vmem:[%s1 + $0x44] sm:$0xf]
  %v57 = vld [vmem:[%s1 + $0x48] sm:$0xf]
  %v58 = vld [vmem:[%s1 + $0x4c] sm:$0xf]
  %v59 = vld [vmem:[%s1 + $0x50] sm:$0xf]
  %v60 = vld [vmem:[%s1 + $0x54] sm:$0xf]
  %v61 = vld [vmem:[%s1 + $0x58] sm:$0xf]
  %v62 = vld [vmem:[%s1 + $0x5c] sm:$0xf]
  %v63 = vld [vmem:[%s1 + $0x60] sm:$0xf]
  %v64 = vld [vmem:[%s1 + $0x64] sm:$0xf]
  %v65 = vld [vmem:[%s1 + $0x68] sm:$0xf]
  %v66 = vld [vmem:[%s1 + $0x6c] sm:$0xf]
  %v67 = vld [vmem:[%s1 + $0x70] sm:$0xf]
  %v68 = vld [vmem:[%s1 + $0x74] sm:$0xf]
  %v69 = vld [vmem:[%s1 + $0x78] sm:$0xf]
  %v70 = vld [vmem:[%s1 + $0x7c] sm:$0xf]
  %v103 = vunpack.c.l.b16 %v39
  %v104 = vunpack.c.l.b16 %v40
  %v105 = vunpack.c.l.b16 %v41
  %v106 = vunpack.c.l.b16 %v42
  %v107 = vunpack.c.l.b16 %v43
  %v108 = vunpack.c.l.b16 %v44
  %v109 = vunpack.c.l.b16 %v45
  %v110 = vunpack.c.l.b16 %v46
  %v111 = vunpack.c.l.b16 %v47
  %v112 = vunpack.c.l.b16 %v48
  %v113 = vunpack.c.l.b16 %v49
  %v114 = vunpack.c.l.b16 %v50
  %v115 = vunpack.c.l.b16 %v51
  %v116 = vunpack.c.l.b16 %v52
  %v117 = vunpack.c.l.b16 %v53
  %v118 = vunpack.c.l.b16 %v54
  %v119 = vunpack.c.l.b16 %v55
  %v120 = vunpack.c.l.b16 %v56
  %v121 = vunpack.c.l.b16 %v57
  %v122 = vunpack.c.l.b16 %v58
  %v123 = vunpack.c.l.b16 %v59
  %v124 = vunpack.c.l.b16 %v60
  %v125 = vunpack.c.l.b16 %v61
  %v126 = vunpack.c.l.b16 %v62
  %v127 = vunpack.c.l.b16 %v63
  %v128 = vunpack.c.l.b16 %v64
  %v129 = vunpack.c.l.b16 %v65
  %v130 = vunpack.c.l.b16 %v66
  %v131 = vunpack.c.l.b16 %v67
  %v132 = vunpack.c.l.b16 %v68
  %v133 = vunpack.c.l.b16 %v69
  %v134 = vunpack.c.l.b16 %v70
  %v135 = vpack.c.b16 %v104, %v103
  %v136 = vpack.c.b16 %v106, %v105
  %v137 = vpack.c.b16 %v108, %v107
  %v138 = vpack.c.b16 %v110, %v109
  %v139 = vpack.c.b16 %v112, %v111
  %v140 = vpack.c.b16 %v114, %v113
  %v141 = vpack.c.b16 %v116, %v115
  %v142 = vpack.c.b16 %v118, %v117
  %v143 = vpack.c.b16 %v120, %v119
  %v144 = vpack.c.b16 %v122, %v121
  %v145 = vpack.c.b16 %v124, %v123
  %v146 = vpack.c.b16 %v126, %v125
  %v147 = vpack.c.b16 %v128, %v127
  %v148 = vpack.c.b16 %v130, %v129
  %v149 = vpack.c.b16 %v132, %v131
  %v150 = vpack.c.b16 %v134, %v133
  %167 = vmatpush.bf16.msra.mxu0 %v142
  %168 = vmatpush.bf16.msra.mxu0 %v141
  %169 = vmatpush.bf16.msra.mxu0 %v140
  %170 = vmatpush.bf16.msra.mxu0 %v139
  %171 = vmatpush.bf16.msra.mxu0 %v138
  %172 = vmatpush.bf16.msra.mxu0 %v137
  %173 = vmatpush.bf16.msra.mxu0 %v136
  %174 = vmatpush.bf16.msra.mxu0 %v135
  %175 = vmatmul.bf16.gmra.mxu0 %v37
  %v176 = vpop.f32.mrf.mxu0
  %v177 = vadd.f32 0.0, %v176
  %v178 = vpop.f32.mrf.mxu0
  %v179 = vadd.f32 0.0, %v178
  %180 = vdwg.mxu0
  %181 = vmatpush.bf16.msra.mxu0 %v150
  %182 = vmatpush.bf16.msra.mxu0 %v149
  %183 = vmatpush.bf16.msra.mxu0 %v148
  %184 = vmatpush.bf16.msra.mxu0 %v147
  %185 = vmatpush.bf16.msra.mxu0 %v146
  %186 = vmatpush.bf16.msra.mxu0 %v145
  %187 = vmatpush.bf16.msra.mxu0 %v144
  %188 = vmatpush.bf16.msra.mxu0 %v143
  %189 = vmatmul.bf16.gmra.mxu0 %v38
  %v190 = vpop.f32.mrf.mxu0
  %v191 = vadd.f32 %v177, %v190
  %v192 = vpop.f32.mrf.mxu0
  %v193 = vadd.f32 %v179, %v192
  %194 = vdwg.mxu0
  %v195 = vld [vmem:[%s3] sm:$0xf]
  %v196 = vld [vmem:[%s3 + $0x4] sm:$0xf]
  %v197 = vpack.c.bf16 %v193, %v191
  %v198 = vld [vmem:[%s4] sm:$0xff]
  %v199 = vld [vmem:[%s4 + $0x8] sm:$0xff]
  %201 = vset.pattern.permute.xlu0 0
  %202 = vperm.xlu0 %201, %v198
  %v203 = vpop.permute.xlu0 %202
  %206 = vset.pattern.permute.xlu0 0
  %207 = vperm.xlu0 %206, %v199
  %v208 = vpop.permute.xlu0 %207
  %v212 = vunpack.c.l.b16 %v195
  %v213 = vunpack.c.l.b16 %v196
  %v214 = vpack.c.b16 %v213, %v212
  %vm215 = vcmask 130048
  %v217 = vsel %vm215, %v214, 0
  %219 = vmatpush.bf16.msra.mxu0 0
  %220 = vmatpush.bf16.msra.mxu0 0
  %221 = vmatpush.bf16.msra.mxu0 0
  %222 = vmatpush.bf16.msra.mxu0 0
  %223 = vmatpush.bf16.msra.mxu0 0
  %224 = vmatpush.bf16.msra.mxu0 0
  %225 = vmatpush.bf16.msra.mxu0 0
  %226 = vmatpush.bf16.msra.mxu0 %v197
  %227 = vmatmul.bf16.gmra.mxu0 %v217
  %v228 = vpop.f32.mrf.mxu0
  %v229 = vadd.f32 %v203, %v228
  %v230 = vpop.f32.mrf.mxu0
  %v231 = vadd.f32 %v208, %v230
  %232 = vdwg.mxu0
  %v233 = vmul.f32 %v229, 0.5
  %v234 = vmul.f32 %v231, 0.5
  %v235 = vmul.f32 %v229, 0.70710677
  %v236 = vmul.f32 %v231, 0.70710677
  %v237 = vand.u32 2147483647, %v235
  %v238 = vand.u32 2147483647, %v236
  %v239 = vmul.f32 %v237, 0.3275911
  %v240 = vmul.f32 %v238, 0.3275911
  %v241 = vadd.f32 %v239, 1.0
  %v242 = vadd.f32 %v240, 1.0
  %v243 = vrcp.pop %v241
  %v244 = vmul.f32 %v241, %v243
  %v245 = vsub.f32 1.0, %v244
  %v246 = vmul.f32 %v243, %v245
  %v247 = vadd.f32 %v243, %v246
  %vm248 = vweird.f32 %v241
  %vm249 = vweird.f32 %v243
  %vm250 = vmor %vm248, %vm249
  %v251 = vsel %vm250, %v243, %v247
  %v252 = vand.u32 2147483647, %v241
  %vm253 = vcmp.eq.f32.partialorder %v252, 8.507059e+37
  %v254 = vand.u32 %v241, 2147483648
  %v255 = vor.u32 1.1754944e-38, %v254
  %v256 = vsel %vm253, %v255, %v251
  %v257 = vmul.f32 1.0, %v256
  %v258 = vrcp.pop %v242
  %v259 = vmul.f32 %v242, %v258
  %v260 = vsub.f32 1.0, %v259
  %v261 = vmul.f32 %v258, %v260
  %v262 = vadd.f32 %v258, %v261
  %vm263 = vweird.f32 %v242
  %vm264 = vweird.f32 %v258
  %vm265 = vmor %vm263, %vm264
  %v266 = vsel %vm265, %v258, %v262
  %v267 = vand.u32 2147483647, %v242
  %vm268 = vcmp.eq.f32.partialorder %v267, 8.507059e+37
  %v269 = vand.u32 %v242, 2147483648
  %v270 = vor.u32 1.1754944e-38, %v269
  %v271 = vsel %vm268, %v270, %v266
  %v272 = vmul.f32 1.0, %v271
  %v273 = vmul.f32 %v257, 1.0614054
  %v274 = vmul.f32 %v272, 1.0614054
  %v275 = vadd.f32 %v273, -1.4531521
  %v276 = vadd.f32 %v274, -1.4531521
  %v277 = vmul.f32 %v257, %v275
  %v278 = vmul.f32 %v272, %v276
  %v279 = vadd.f32 %v277, 1.4214138
  %v280 = vadd.f32 %v278, 1.4214138
  %v281 = vmul.f32 %v257, %v279
  %v282 = vmul.f32 %v272, %v280
  %v283 = vadd.f32 %v281, -0.28449672
  %v284 = vadd.f32 %v282, -0.28449672
  %v285 = vmul.f32 %v257, %v283
  %v286 = vmul.f32 %v272, %v284
  %v287 = vadd.f32 %v285, 0.2548296
  %v288 = vadd.f32 %v286, 0.2548296
  %v289 = vmul.f32 %v257, %v287
  %v290 = vmul.f32 %v272, %v288
  %v291 = vsub.f32 0.0, %v237
  %v292 = vsub.f32 0.0, %v238
  %v293 = vmul.f32 %v291, %v237
  %v294 = vmul.f32 %v292, %v238
  %v295 = vmul.f32 %v293, 1.442695
  %v296 = vpow.pop %v295
  %v297 = vmul.f32 %v294, 1.442695
  %v298 = vpow.pop %v297
  %v299 = vmul.f32 %v289, %v296
  %v300 = vmul.f32 %v290, %v298
  %v301 = vsub.f32 1.0, %v299
  %v302 = vsub.f32 1.0, %v300
  %vm303 = vcmp.lt.f32.partialorder %v235, 0.0
  %vm304 = vcmp.lt.f32.partialorder %v236, 0.0
  %v305 = vsub.f32 0.0, %v301
  %v306 = vsub.f32 0.0, %v302
  %v307 = vsel %vm303, %v305, %v301
  %v308 = vsel %vm304, %v306, %v302
  %v309 = vadd.f32 %v307, 1.0
  %v310 = vadd.f32 %v308, 1.0
  %v311 = vmul.f32 %v233, %v309
  %v312 = vmul.f32 %v234, %v310
  %v313 = vld [vmem:[%s5] sm:$0xf]
  %v314 = vld [vmem:[%s5 + $0x4] sm:$0xf]
  %v315 = vpack.c.bf16 %v312, %v311
  %v316 = vld [vmem:[%s6] sm:$0xff]
  %v317 = vld [vmem:[%s6 + $0x8] sm:$0xff]
  %319 = vset.pattern.permute.xlu0 0
  %320 = vperm.xlu0 %319, %v316
  %v321 = vpop.permute.xlu0 %320
  %324 = vset.pattern.permute.xlu0 0
  %325 = vperm.xlu0 %324, %v317
  %v326 = vpop.permute.xlu0 %325
  %v330 = vunpack.c.l.b16 %v313
  %v331 = vunpack.c.l.b16 %v314
  %v332 = vpack.c.b16 %v331, %v330
  %v334 = vsel %vm215, %v332, 0
  %336 = vmatpush.bf16.msra.mxu0 0
  %337 = vmatpush.bf16.msra.mxu0 0
  %338 = vmatpush.bf16.msra.mxu0 0
  %339 = vmatpush.bf16.msra.mxu0 0
  %340 = vmatpush.bf16.msra.mxu0 0
  %341 = vmatpush.bf16.msra.mxu0 0
  %342 = vmatpush.bf16.msra.mxu0 0
  %343 = vmatpush.bf16.msra.mxu0 %v315
  %344 = vmatmul.bf16.gmra.mxu0 %v334
  %v345 = vpop.f32.mrf.mxu0
  %v346 = vadd.f32 %v321, %v345
  %v347 = vpop.f32.mrf.mxu0
  %v348 = vadd.f32 %v326, %v347
  %349 = vdwg.mxu0
  %v350 = vmul.f32 %v346, 0.5
  %v351 = vmul.f32 %v348, 0.5
  %v352 = vmul.f32 %v346, 0.70710677
  %v353 = vmul.f32 %v348, 0.70710677
  %v354 = vand.u32 2147483647, %v352
  %v355 = vand.u32 2147483647, %v353
  %v356 = vmul.f32 %v354, 0.3275911
  %v357 = vmul.f32 %v355, 0.3275911
  %v358 = vadd.f32 %v356, 1.0
  %v359 = vadd.f32 %v357, 1.0
  %v360 = vrcp.pop %v358
  %v361 = vmul.f32 %v358, %v360
  %v362 = vsub.f32 1.0, %v361
  %v363 = vmul.f32 %v360, %v362
  %v364 = vadd.f32 %v360, %v363
  %vm365 = vweird.f32 %v358
  %vm366 = vweird.f32 %v360
  %vm367 = vmor %vm365, %vm366
  %v368 = vsel %vm367, %v360, %v364
  %v369 = vand.u32 2147483647, %v358
  %vm370 = vcmp.eq.f32.partialorder %v369, 8.507059e+37
  %v371 = vand.u32 %v358, 2147483648
  %v372 = vor.u32 1.1754944e-38, %v371
  %v373 = vsel %vm370, %v372, %v368
  %v374 = vmul.f32 1.0, %v373
  %v375 = vrcp.pop %v359
  %v376 = vmul.f32 %v359, %v375
  %v377 = vsub.f32 1.0, %v376
  %v378 = vmul.f32 %v375, %v377
  %v379 = vadd.f32 %v375, %v378
  %vm380 = vweird.f32 %v359
  %vm381 = vweird.f32 %v375
  %vm382 = vmor %vm380, %vm381
  %v383 = vsel %vm382, %v375, %v379
  %v384 = vand.u32 2147483647, %v359
  %vm385 = vcmp.eq.f32.partialorder %v384, 8.507059e+37
  %v386 = vand.u32 %v359, 2147483648
  %v387 = vor.u32 1.1754944e-38, %v386
  %v388 = vsel %vm385, %v387, %v383
  %v389 = vmul.f32 1.0, %v388
  %v390 = vmul.f32 %v374, 1.0614054
  %v391 = vmul.f32 %v389, 1.0614054
  %v392 = vadd.f32 %v390, -1.4531521
  %v393 = vadd.f32 %v391, -1.4531521
  %v394 = vmul.f32 %v374, %v392
  %v395 = vmul.f32 %v389, %v393
  %v396 = vadd.f32 %v394, 1.4214138
  %v397 = vadd.f32 %v395, 1.4214138
  %v398 = vmul.f32 %v374, %v396
  %v399 = vmul.f32 %v389, %v397
  %v400 = vadd.f32 %v398, -0.28449672
  %v401 = vadd.f32 %v399, -0.28449672
  %v402 = vmul.f32 %v374, %v400
  %v403 = vmul.f32 %v389, %v401
  %v404 = vadd.f32 %v402, 0.2548296
  %v405 = vadd.f32 %v403, 0.2548296
  %v406 = vmul.f32 %v374, %v404
  %v407 = vmul.f32 %v389, %v405
  %v408 = vsub.f32 0.0, %v354
  %v409 = vsub.f32 0.0, %v355
  %v410 = vmul.f32 %v408, %v354
  %v411 = vmul.f32 %v409, %v355
  %v412 = vmul.f32 %v410, 1.442695
  %v413 = vpow.pop %v412
  %v414 = vmul.f32 %v411, 1.442695
  %v415 = vpow.pop %v414
  %v416 = vmul.f32 %v406, %v413
  %v417 = vmul.f32 %v407, %v415
  %v418 = vsub.f32 1.0, %v416
  %v419 = vsub.f32 1.0, %v417
  %vm420 = vcmp.lt.f32.partialorder %v352, 0.0
  %vm421 = vcmp.lt.f32.partialorder %v353, 0.0
  %v422 = vsub.f32 0.0, %v418
  %v423 = vsub.f32 0.0, %v419
  %v424 = vsel %vm420, %v422, %v418
  %v425 = vsel %vm421, %v423, %v419
  %v426 = vadd.f32 %v424, 1.0
  %v427 = vadd.f32 %v425, 1.0
  %v428 = vmul.f32 %v350, %v426
  %v429 = vmul.f32 %v351, %v427
  %v430 = vpack.c.bf16 %v429, %v428
  %v431 = vld [vmem:[%s7] sm:$0xf]
  %v432 = vld [vmem:[%s7 + $0x4] sm:$0xf]
  %v433 = vld [vmem:[%s7 + $0x8] sm:$0xf]
  %v434 = vld [vmem:[%s7 + $0xc] sm:$0xf]
  %v435 = vld [vmem:[%s7 + $0x10] sm:$0xf]
  %v436 = vld [vmem:[%s7 + $0x14] sm:$0xf]
  %v437 = vld [vmem:[%s7 + $0x18] sm:$0xf]
  %v438 = vld [vmem:[%s7 + $0x1c] sm:$0xf]
  %v439 = vld [vmem:[%s8] sm:$0x1]
  %v441 = vperm.slane %v439, 0
  %v451 = vunpack.c.l.b16 %v431
  %v452 = vunpack.c.l.b16 %v432
  %v453 = vunpack.c.l.b16 %v433
  %v454 = vunpack.c.l.b16 %v434
  %v455 = vunpack.c.l.b16 %v435
  %v456 = vunpack.c.l.b16 %v436
  %v457 = vunpack.c.l.b16 %v437
  %v458 = vunpack.c.l.b16 %v438
  %v459 = vpack.c.b16 %v452, %v451
  %v460 = vpack.c.b16 %v454, %v453
  %v461 = vpack.c.b16 %v456, %v455
  %v462 = vpack.c.b16 %v458, %v457
  %vm467 = vcmask 523264
  %v469 = vsel %vm467, %v430, 0
  %471 = vmatpush.bf16.msra.mxu0 0
  %472 = vmatpush.bf16.msra.mxu0 0
  %473 = vmatpush.bf16.msra.mxu0 0
  %474 = vmatpush.bf16.msra.mxu0 0
  %475 = vmatpush.bf16.msra.mxu0 %v462
  %476 = vmatpush.bf16.msra.mxu0 %v461
  %477 = vmatpush.bf16.msra.mxu0 %v460
  %478 = vmatpush.bf16.msra.mxu0 %v459
  %479 = vmatmul.bf16.gmra.mxu0 %v469
  %v480 = vpop.f32.mrf.mxu0
  %v481 = vadd.f32 %v441, %v480
  %v482 = vpop.f32.mrf.mxu0
  %v483 = vadd.f32 %v441, %v482
  %484 = vdwg.mxu0
  %v485 = vmul.f32 %v481, 0.5
  %v486 = vmul.f32 %v483, 0.5
  %v487 = vtanh.pop %v485
  %v488 = vtanh.pop %v486
  %v489 = vadd.f32 %v487, 1.0
  %v490 = vadd.f32 %v488, 1.0
  %v491 = vmul.f32 %v489, 0.5
  %v492 = vmul.f32 %v490, 0.5
  %v493 = vpack.c.bf16 %v492, %v491
  %v494 = vld [vmem:[%s2] sm:$0xff]
  %v495 = vld [vmem:[%s2 + $0x8] sm:$0xff]
  %v496 = vld [vmem:[%s2 + $0x10] sm:$0xff]
  %v497 = vld [vmem:[%s2 + $0x18] sm:$0xff]
  %v498 = vld [vmem:[%s2 + $0x20] sm:$0xff]
  %v499 = vld [vmem:[%s2 + $0x28] sm:$0xff]
  %v500 = vld [vmem:[%s2 + $0x30] sm:$0xff]
  %v501 = vld [vmem:[%s2 + $0x38] sm:$0xff]
  %v510 = vunpack.c.l.b16 %v494
  %v511 = vunpack.c.h.b16 %v494
  %v512 = vunpack.c.l.b16 %v495
  %v513 = vunpack.c.h.b16 %v495
  %v514 = vunpack.c.l.b16 %v496
  %v515 = vunpack.c.h.b16 %v496
  %v516 = vunpack.c.l.b16 %v497
  %v517 = vunpack.c.h.b16 %v497
  %v518 = vunpack.c.l.b16 %v498
  %v519 = vunpack.c.h.b16 %v498
  %v520 = vunpack.c.l.b16 %v499
  %v521 = vunpack.c.h.b16 %v499
  %v522 = vunpack.c.l.b16 %v500
  %v523 = vunpack.c.h.b16 %v500
  %v524 = vunpack.c.l.b16 %v501
  %v525 = vunpack.c.h.b16 %v501
  %v526 = vpack.c.b16 %v512, %v510
  %v527 = vpack.c.b16 %v513, %v511
  %v528 = vpack.c.b16 %v516, %v514
  %v529 = vpack.c.b16 %v517, %v515
  %v530 = vpack.c.b16 %v520, %v518
  %v531 = vpack.c.b16 %v521, %v519
  %v532 = vpack.c.b16 %v524, %v522
  %v533 = vpack.c.b16 %v525, %v523
  %v543 = vsel %vm467, %v493, 0
  %545 = vmatpush.bf16.msra.mxu0 0
  %546 = vmatpush.bf16.msra.mxu0 0
  %547 = vmatpush.bf16.msra.mxu0 0
  %548 = vmatpush.bf16.msra.mxu0 0
  %549 = vmatpush.bf16.msra.mxu0 %v532
  %550 = vmatpush.bf16.msra.mxu0 %v530
  %551 = vmatpush.bf16.msra.mxu0 %v528
  %552 = vmatpush.bf16.msra.mxu0 %v526
  %553 = vmatmul.bf16.gmra.mxu0 %v543
  %v554 = vpop.f32.mrf.mxu0
  %v555 = vadd.f32 0.0, %v554
  %v556 = vpop.f32.mrf.mxu0
  %v557 = vadd.f32 0.0, %v556
  %558 = vdwg.mxu0
  %559 = vmatpush.bf16.msra.mxu0 0
  %560 = vmatpush.bf16.msra.mxu0 0
  %561 = vmatpush.bf16.msra.mxu0 0
  %562 = vmatpush.bf16.msra.mxu0 0
  %563 = vmatpush.bf16.msra.mxu0 %v533
  %564 = vmatpush.bf16.msra.mxu0 %v531
  %565 = vmatpush.bf16.msra.mxu0 %v529
  %566 = vmatpush.bf16.msra.mxu0 %v527
  %567 = vmatmul.bf16.gmra.mxu0 %v543
  %v568 = vpop.f32.mrf.mxu0
  %v569 = vadd.f32 0.0, %v568
  %v570 = vpop.f32.mrf.mxu0
  %v571 = vadd.f32 0.0, %v570
  %572 = vdwg.mxu0
  %v573 = vmul.f32 %v33, %v555
  %v574 = vmul.f32 %v34, %v569
  %v575 = vmul.f32 %v35, %v557
  %v576 = vmul.f32 %v36, %v571
  %577 = vst [vmem:[%s9] sm:$0xff] %v573
  %578 = vst [vmem:[%s9 + $0x8] sm:$0xff] %v574
  %579 = vst [vmem:[%s9 + $0x10] sm:$0xff] %v575
  %580 = vst [vmem:[%s9 + $0x18] sm:$0xff] %v576
  // Predicated region
  $region38: #{gobal_pallas.1} parent=0 // pred_check
    _
  $region39: #{gobal_pallas.1} parent=0 // pred_check_branch
    %582 = sbr.rel (0) target = $region41
  $region40: #{gobal_pallas.1} parent=0 // pred_region
    _
  $region41: #{gobal_pallas.1} parent=0 // pred_fallthru
    _
  // Predicated region
  $region42: #{gobal_pallas.1} parent=0 // pred_check
    _
  $region43: #{gobal_pallas.1} parent=0 // pred_check_branch
    %584 = sbr.rel (0) target = $region45
  $region44: #{gobal_pallas.1} parent=0 // pred_region
    _
  $region45: #{gobal_pallas.1} parent=0 // pred_fallthru
    _

</llo_original>
